<compile_context>
chip_gen: v5e
topology: v5e:2x2
jax: 0.10.0
libtpu: 0.0.40
codegen_flags: <defaults>
</compile_context>

<pallas_src>
import jax
import jax.numpy as jnp
from jax.experimental import pallas as pl
from jax.experimental.pallas import tpu as pltpu


def mlp_kernel(w1_ref, b1_ref, w2_ref, b2_ref, x_ref, o_ref):
    # w1_ref: (8, 2) SMEM, b1_ref: (1, 8) SMEM, w2_ref: (1, 8) SMEM, b2_ref: (1, 1) SMEM
    # x_ref : (2, TB) VMEM  (features x batch-tile, batch on the lane axis)
    # o_ref : (1, TB) VMEM  (lane-dense output)
    n_in = x_ref.shape[0]          # 2
    n_hidden = w1_ref.shape[0]     # 8

    # Load each input-feature row once (full-width (1, TB) vregs).
    xs = [x_ref[k:k + 1, :] for k in range(n_in)]

    # Output accumulator, initialized with the output bias (scalar broadcast from SMEM).
    acc = b2_ref[0, 0] + jnp.zeros(o_ref.shape, o_ref.dtype)

    # Fully unrolled VPU formulation: 8 hidden units x (2 FMAs + bias + ReLU + 1 FMA).
    for j in range(n_hidden):
        h = xs[0] * w1_ref[j, 0]
        for k in range(1, n_in):
            h = h + xs[k] * w1_ref[j, k]
        h = jnp.maximum(h + b1_ref[0, j], 0.0)
        acc = acc + h * w2_ref[0, j]

    o_ref[...] = acc


def my_neural_net_forward(x, w1, b1, w2, b2, *, block_b=512):
    """Fused forward pass of MyNeuralNet.

    x : (B, 2) float32
    w1: (8, 2), b1: (8,)   -- input_to_hidden_layer (PyTorch layout)
    w2: (1, 8), b2: (1,)   -- hidden_to_output_layer (PyTorch layout)
    Returns (B, 1) float32.
    """
    B = x.shape[0]
    H = w1.shape[0]

    # Put the batch on the lane axis and pad it to a multiple of the lane-tile.
    x_t = x.T.astype(jnp.float32)                 # (2, B)
    n_blocks = pl.cdiv(B, block_b)
    B_pad = n_blocks * block_b
    if B_pad != B:
        x_t = jnp.pad(x_t, ((0, 0), (0, B_pad - B)))

    b1_2d = b1.reshape(1, H)
    b2_2d = b2.reshape(1, 1)

    smem_spec = pl.BlockSpec(memory_space=pltpu.MemorySpace.SMEM)

    out_t = pl.pallas_call(
        mlp_kernel,
        out_shape=jax.ShapeDtypeStruct((1, B_pad), jnp.float32),
        grid=(n_blocks,),
        in_specs=[
            smem_spec,                                       # w1 (8, 2)
            smem_spec,                                       # b1 (1, 8)
            smem_spec,                                       # w2 (1, 8)
            smem_spec,                                       # b2 (1, 1)
            pl.BlockSpec((2, block_b), lambda i: (0, i)),    # x_t, lane-tiled over batch
        ],
        out_specs=pl.BlockSpec((1, block_b), lambda i: (0, i)),
        compiler_params=pltpu.CompilerParams(
            dimension_semantics=("parallel",),
        ),
    )(w1, b1_2d, w2, b2_2d, x_t)

    # Strip batch padding and restore the (B, 1) PyTorch output layout.
    return out_t[0, :B].reshape(B, 1)


def init_params(key):
    """Deterministic init mimicking nn.Linear defaults: U(-1/sqrt(fan_in), 1/sqrt(fan_in))."""
    k1, k2, k3, k4 = jax.random.split(key, 4)
    bound1 = 1.0 / jnp.sqrt(2.0)
    w1 = jax.random.uniform(k1, (8, 2), jnp.float32, -bound1, bound1)
    b1 = jax.random.uniform(k2, (8,), jnp.float32, -bound1, bound1)
    bound2 = 1.0 / jnp.sqrt(8.0)
    w2 = jax.random.uniform(k3, (1, 8), jnp.float32, -bound2, bound2)
    b2 = jax.random.uniform(k4, (1,), jnp.float32, -bound2, bound2)
    return w1, b1, w2, b2


if __name__ == "__main__":
    key = jax.random.PRNGKey(0)
    w1, b1, w2, b2 = init_params(key)

    # Same input as the PyTorch script: x = [[1,2],[3,4],[5,6],[7,8]]
    x = jnp.array([[1.0, 2.0], [3.0, 4.0], [5.0, 6.0], [7.0, 8.0]], dtype=jnp.float32)

    out = my_neural_net_forward(x, w1, b1, w2, b2)
    out = jax.block_until_ready(out)

    ref = jnp.maximum(x @ w1.T + b1, 0.0) @ w2.T + b2
    assert out.shape == (4, 1)
    assert jnp.allclose(out, ref, atol=1e-5, rtol=1e-5), (out, ref)

    # Secondary check: batch large enough to exercise grid > 1 plus the padding path.
    x2 = jax.random.normal(jax.random.PRNGKey(1), (300, 2), jnp.float32)
    out2 = jax.block_until_ready(my_neural_net_forward(x2, w1, b1, w2, b2, block_b=128))
    ref2 = jnp.maximum(x2 @ w1.T + b1, 0.0) @ w2.T + b2
    assert out2.shape == (300, 1)
    assert jnp.allclose(out2, ref2, atol=1e-5, rtol=1e-5)

    print("KERNEL_OK")
</pallas_src>

<mosaic_0001>
module attributes {stable_mosaic.version = 11 : i64} {
  func.func @mlp_kernel(%arg0: i32, %arg1: memref<8x2xf32, #tpu.memory_space<smem>>, %arg2: memref<1x8xf32, #tpu.memory_space<smem>>, %arg3: memref<1x8xf32, #tpu.memory_space<smem>>, %arg4: memref<1x1xf32, #tpu.memory_space<smem>>, %arg5: memref<2x512xf32, #tpu.memory_space<vmem>>, %arg6: memref<1x512xf32, #tpu.memory_space<vmem>>) attributes {dimension_semantics = [#tpu.dimension_semantics<parallel>], iteration_bounds = array<i64: 1>, scalar_prefetch = 0 : i64, scratch_operands = 0 : i64, tpu.core_type = #tpu.core_type<tc>, window_params = [{transform_indices = @transform_0, window_bounds = array<i64: 8, 2>}, {transform_indices = @transform_1, window_bounds = array<i64: 1, 8>}, {transform_indices = @transform_2, window_bounds = array<i64: 1, 8>}, {transform_indices = @transform_3, window_bounds = array<i64: 1, 1>}, {transform_indices = @transform_4, window_bounds = array<i64: 2, 512>}, {transform_indices = @transform_5, window_bounds = array<i64: 1, 512>}]} {
    %c0 = arith.constant 0 : index
    %c0_0 = arith.constant 0 : index
    %0 = vector.load %arg5[%c0, %c0_0] : memref<2x512xf32, #tpu.memory_space<vmem>>, vector<1x512xf32>
    %c1 = arith.constant 1 : index
    %c0_1 = arith.constant 0 : index
    %1 = vector.load %arg5[%c1, %c0_1] : memref<2x512xf32, #tpu.memory_space<vmem>>, vector<1x512xf32>
    %c0_2 = arith.constant 0 : index
    %c0_3 = arith.constant 0 : index
    %2 = memref.load %arg4[%c0_2, %c0_3] : memref<1x1xf32, #tpu.memory_space<smem>>
    %cst = arith.constant 0.000000e+00 : f32
    %3 = vector.broadcast %cst : f32 to vector<1x512xf32>
    %4 = vector.broadcast %2 : f32 to vector<1x512xf32>
    %5 = arith.addf %4, %3 : vector<1x512xf32>
    %c0_4 = arith.constant 0 : index
    %c0_5 = arith.constant 0 : index
    %6 = memref.load %arg1[%c0_4, %c0_5] : memref<8x2xf32, #tpu.memory_space<smem>>
    %7 = vector.broadcast %6 : f32 to vector<1x512xf32>
    %8 = arith.mulf %0, %7 : vector<1x512xf32>
    %c0_6 = arith.constant 0 : index
    %c1_7 = arith.constant 1 : index
    %9 = memref.load %arg1[%c0_6, %c1_7] : memref<8x2xf32, #tpu.memory_space<smem>>
    %10 = vector.broadcast %9 : f32 to vector<1x512xf32>
    %11 = arith.mulf %1, %10 : vector<1x512xf32>
    %12 = arith.addf %8, %11 : vector<1x512xf32>
    %c0_8 = arith.constant 0 : index
    %c0_9 = arith.constant 0 : index
    %13 = memref.load %arg2[%c0_8, %c0_9] : memref<1x8xf32, #tpu.memory_space<smem>>
    %14 = vector.broadcast %13 : f32 to vector<1x512xf32>
    %15 = arith.addf %12, %14 : vector<1x512xf32>
    %cst_10 = arith.constant 0.000000e+00 : f32
    %16 = vector.broadcast %cst_10 : f32 to vector<1x512xf32>
    %17 = arith.maximumf %15, %16 : vector<1x512xf32>
    %c0_11 = arith.constant 0 : index
    %c0_12 = arith.constant 0 : index
    %18 = memref.load %arg3[%c0_11, %c0_12] : memref<1x8xf32, #tpu.memory_space<smem>>
    %19 = vector.broadcast %18 : f32 to vector<1x512xf32>
    %20 = arith.mulf %17, %19 : vector<1x512xf32>
    %21 = arith.addf %5, %20 : vector<1x512xf32>
    %c1_13 = arith.constant 1 : index
    %c0_14 = arith.constant 0 : index
    %22 = memref.load %arg1[%c1_13, %c0_14] : memref<8x2xf32, #tpu.memory_space<smem>>
    %23 = vector.broadcast %22 : f32 to vector<1x512xf32>
    %24 = arith.mulf %0, %23 : vector<1x512xf32>
    %c1_15 = arith.constant 1 : index
    %c1_16 = arith.constant 1 : index
    %25 = memref.load %arg1[%c1_15, %c1_16] : memref<8x2xf32, #tpu.memory_space<smem>>
    %26 = vector.broadcast %25 : f32 to vector<1x512xf32>
    %27 = arith.mulf %1, %26 : vector<1x512xf32>
    %28 = arith.addf %24, %27 : vector<1x512xf32>
    %c0_17 = arith.constant 0 : index
    %c1_18 = arith.constant 1 : index
    %29 = memref.load %arg2[%c0_17, %c1_18] : memref<1x8xf32, #tpu.memory_space<smem>>
    %30 = vector.broadcast %29 : f32 to vector<1x512xf32>
    %31 = arith.addf %28, %30 : vector<1x512xf32>
    %cst_19 = arith.constant 0.000000e+00 : f32
    %32 = vector.broadcast %cst_19 : f32 to vector<1x512xf32>
    %33 = arith.maximumf %31, %32 : vector<1x512xf32>
    %c0_20 = arith.constant 0 : index
    %c1_21 = arith.constant 1 : index
    %34 = memref.load %arg3[%c0_20, %c1_21] : memref<1x8xf32, #tpu.memory_space<smem>>
    %35 = vector.broadcast %34 : f32 to vector<1x512xf32>
    %36 = arith.mulf %33, %35 : vector<1x512xf32>
    %37 = arith.addf %21, %36 : vector<1x512xf32>
    %c2 = arith.constant 2 : index
    %c0_22 = arith.constant 0 : index
    %38 = memref.load %arg1[%c2, %c0_22] : memref<8x2xf32, #tpu.memory_space<smem>>
    %39 = vector.broadcast %38 : f32 to vector<1x512xf32>
    %40 = arith.mulf %0, %39 : vector<1x512xf32>
    %c2_23 = arith.constant 2 : index
    %c1_24 = arith.constant 1 : index
    %41 = memref.load %arg1[%c2_23, %c1_24] : memref<8x2xf32, #tpu.memory_space<smem>>
    %42 = vector.broadcast %41 : f32 to vector<1x512xf32>
    %43 = arith.mulf %1, %42 : vector<1x512xf32>
    %44 = arith.addf %40, %43 : vector<1x512xf32>
    %c0_25 = arith.constant 0 : index
    %c2_26 = arith.constant 2 : index
    %45 = memref.load %arg2[%c0_25, %c2_26] : memref<1x8xf32, #tpu.memory_space<smem>>
    %46 = vector.broadcast %45 : f32 to vector<1x512xf32>
    %47 = arith.addf %44, %46 : vector<1x512xf32>
    %cst_27 = arith.constant 0.000000e+00 : f32
    %48 = vector.broadcast %cst_27 : f32 to vector<1x512xf32>
    %49 = arith.maximumf %47, %48 : vector<1x512xf32>
    %c0_28 = arith.constant 0 : index
    %c2_29 = arith.constant 2 : index
    %50 = memref.load %arg3[%c0_28, %c2_29] : memref<1x8xf32, #tpu.memory_space<smem>>
    %51 = vector.broadcast %50 : f32 to vector<1x512xf32>
    %52 = arith.mulf %49, %51 : vector<1x512xf32>
    %53 = arith.addf %37, %52 : vector<1x512xf32>
    %c3 = arith.constant 3 : index
    %c0_30 = arith.constant 0 : index
    %54 = memref.load %arg1[%c3, %c0_30] : memref<8x2xf32, #tpu.memory_space<smem>>
    %55 = vector.broadcast %54 : f32 to vector<1x512xf32>
    %56 = arith.mulf %0, %55 : vector<1x512xf32>
    %c3_31 = arith.constant 3 : index
    %c1_32 = arith.constant 1 : index
    %57 = memref.load %arg1[%c3_31, %c1_32] : memref<8x2xf32, #tpu.memory_space<smem>>
    %58 = vector.broadcast %57 : f32 to vector<1x512xf32>
    %59 = arith.mulf %1, %58 : vector<1x512xf32>
    %60 = arith.addf %56, %59 : vector<1x512xf32>
    %c0_33 = arith.constant 0 : index
    %c3_34 = arith.constant 3 : index
    %61 = memref.load %arg2[%c0_33, %c3_34] : memref<1x8xf32, #tpu.memory_space<smem>>
    %62 = vector.broadcast %61 : f32 to vector<1x512xf32>
    %63 = arith.addf %60, %62 : vector<1x512xf32>
    %cst_35 = arith.constant 0.000000e+00 : f32
    %64 = vector.broadcast %cst_35 : f32 to vector<1x512xf32>
    %65 = arith.maximumf %63, %64 : vector<1x512xf32>
    %c0_36 = arith.constant 0 : index
    %c3_37 = arith.constant 3 : index
    %66 = memref.load %arg3[%c0_36, %c3_37] : memref<1x8xf32, #tpu.memory_space<smem>>
    %67 = vector.broadcast %66 : f32 to vector<1x512xf32>
    %68 = arith.mulf %65, %67 : vector<1x512xf32>
    %69 = arith.addf %53, %68 : vector<1x512xf32>
    %c4 = arith.constant 4 : index
    %c0_38 = arith.constant 0 : index
    %70 = memref.load %arg1[%c4, %c0_38] : memref<8x2xf32, #tpu.memory_space<smem>>
    %71 = vector.broadcast %70 : f32 to vector<1x512xf32>
    %72 = arith.mulf %0, %71 : vector<1x512xf32>
    %c4_39 = arith.constant 4 : index
    %c1_40 = arith.constant 1 : index
    %73 = memref.load %arg1[%c4_39, %c1_40] : memref<8x2xf32, #tpu.memory_space<smem>>
    %74 = vector.broadcast %73 : f32 to vector<1x512xf32>
    %75 = arith.mulf %1, %74 : vector<1x512xf32>
    %76 = arith.addf %72, %75 : vector<1x512xf32>
    %c0_41 = arith.constant 0 : index
    %c4_42 = arith.constant 4 : index
    %77 = memref.load %arg2[%c0_41, %c4_42] : memref<1x8xf32, #tpu.memory_space<smem>>
    %78 = vector.broadcast %77 : f32 to vector<1x512xf32>
    %79 = arith.addf %76, %78 : vector<1x512xf32>
    %cst_43 = arith.constant 0.000000e+00 : f32
    %80 = vector.broadcast %cst_43 : f32 to vector<1x512xf32>
    %81 = arith.maximumf %79, %80 : vector<1x512xf32>
    %c0_44 = arith.constant 0 : index
    %c4_45 = arith.constant 4 : index
    %82 = memref.load %arg3[%c0_44, %c4_45] : memref<1x8xf32, #tpu.memory_space<smem>>
    %83 = vector.broadcast %82 : f32 to vector<1x512xf32>
    %84 = arith.mulf %81, %83 : vector<1x512xf32>
    %85 = arith.addf %69, %84 : vector<1x512xf32>
    %c5 = arith.constant 5 : index
    %c0_46 = arith.constant 0 : index
    %86 = memref.load %arg1[%c5, %c0_46] : memref<8x2xf32, #tpu.memory_space<smem>>
    %87 = vector.broadcast %86 : f32 to vector<1x512xf32>
    %88 = arith.mulf %0, %87 : vector<1x512xf32>
    %c5_47 = arith.constant 5 : index
    %c1_48 = arith.constant 1 : index
    %89 = memref.load %arg1[%c5_47, %c1_48] : memref<8x2xf32, #tpu.memory_space<smem>>
    %90 = vector.broadcast %89 : f32 to vector<1x512xf32>
    %91 = arith.mulf %1, %90 : vector<1x512xf32>
    %92 = arith.addf %88, %91 : vector<1x512xf32>
    %c0_49 = arith.constant 0 : index
    %c5_50 = arith.constant 5 : index
    %93 = memref.load %arg2[%c0_49, %c5_50] : memref<1x8xf32, #tpu.memory_space<smem>>
    %94 = vector.broadcast %93 : f32 to vector<1x512xf32>
    %95 = arith.addf %92, %94 : vector<1x512xf32>
    %cst_51 = arith.constant 0.000000e+00 : f32
    %96 = vector.broadcast %cst_51 : f32 to vector<1x512xf32>
    %97 = arith.maximumf %95, %96 : vector<1x512xf32>
    %c0_52 = arith.constant 0 : index
    %c5_53 = arith.constant 5 : index
    %98 = memref.load %arg3[%c0_52, %c5_53] : memref<1x8xf32, #tpu.memory_space<smem>>
    %99 = vector.broadcast %98 : f32 to vector<1x512xf32>
    %100 = arith.mulf %97, %99 : vector<1x512xf32>
    %101 = arith.addf %85, %100 : vector<1x512xf32>
    %c6 = arith.constant 6 : index
    %c0_54 = arith.constant 0 : index
    %102 = memref.load %arg1[%c6, %c0_54] : memref<8x2xf32, #tpu.memory_space<smem>>
    %103 = vector.broadcast %102 : f32 to vector<1x512xf32>
    %104 = arith.mulf %0, %103 : vector<1x512xf32>
    %c6_55 = arith.constant 6 : index
    %c1_56 = arith.constant 1 : index
    %105 = memref.load %arg1[%c6_55, %c1_56] : memref<8x2xf32, #tpu.memory_space<smem>>
    %106 = vector.broadcast %105 : f32 to vector<1x512xf32>
    %107 = arith.mulf %1, %106 : vector<1x512xf32>
    %108 = arith.addf %104, %107 : vector<1x512xf32>
    %c0_57 = arith.constant 0 : index
    %c6_58 = arith.constant 6 : index
    %109 = memref.load %arg2[%c0_57, %c6_58] : memref<1x8xf32, #tpu.memory_space<smem>>
    %110 = vector.broadcast %109 : f32 to vector<1x512xf32>
    %111 = arith.addf %108, %110 : vector<1x512xf32>
    %cst_59 = arith.constant 0.000000e+00 : f32
    %112 = vector.broadcast %cst_59 : f32 to vector<1x512xf32>
    %113 = arith.maximumf %111, %112 : vector<1x512xf32>
    %c0_60 = arith.constant 0 : index
    %c6_61 = arith.constant 6 : index
    %114 = memref.load %arg3[%c0_60, %c6_61] : memref<1x8xf32, #tpu.memory_space<smem>>
    %115 = vector.broadcast %114 : f32 to vector<1x512xf32>
    %116 = arith.mulf %113, %115 : vector<1x512xf32>
    %117 = arith.addf %101, %116 : vector<1x512xf32>
    %c7 = arith.constant 7 : index
    %c0_62 = arith.constant 0 : index
    %118 = memref.load %arg1[%c7, %c0_62] : memref<8x2xf32, #tpu.memory_space<smem>>
    %119 = vector.broadcast %118 : f32 to vector<1x512xf32>
    %120 = arith.mulf %0, %119 : vector<1x512xf32>
    %c7_63 = arith.constant 7 : index
    %c1_64 = arith.constant 1 : index
    %121 = memref.load %arg1[%c7_63, %c1_64] : memref<8x2xf32, #tpu.memory_space<smem>>
    %122 = vector.broadcast %121 : f32 to vector<1x512xf32>
    %123 = arith.mulf %1, %122 : vector<1x512xf32>
    %124 = arith.addf %120, %123 : vector<1x512xf32>
    %c0_65 = arith.constant 0 : index
    %c7_66 = arith.constant 7 : index
    %125 = memref.load %arg2[%c0_65, %c7_66] : memref<1x8xf32, #tpu.memory_space<smem>>
    %126 = vector.broadcast %125 : f32 to vector<1x512xf32>
    %127 = arith.addf %124, %126 : vector<1x512xf32>
    %cst_67 = arith.constant 0.000000e+00 : f32
    %128 = vector.broadcast %cst_67 : f32 to vector<1x512xf32>
    %129 = arith.maximumf %127, %128 : vector<1x512xf32>
    %c0_68 = arith.constant 0 : index
    %c7_69 = arith.constant 7 : index
    %130 = memref.load %arg3[%c0_68, %c7_69] : memref<1x8xf32, #tpu.memory_space<smem>>
    %131 = vector.broadcast %130 : f32 to vector<1x512xf32>
    %132 = arith.mulf %129, %131 : vector<1x512xf32>
    %133 = arith.addf %117, %132 : vector<1x512xf32>
    %c0_70 = arith.constant 0 : index
    %c0_71 = arith.constant 0 : index
    %134 = vector.load %arg6[%c0_70, %c0_71] : memref<1x512xf32, #tpu.memory_space<vmem>>, vector<1x512xf32>
    tpu.vector_store %arg6[%c0_70, %c0_71], %133 {strides = array<i32>} : memref<1x512xf32, #tpu.memory_space<vmem>>, vector<1x512xf32>,
    return
  }
  func.func @transform_0(%arg0: i32) -> (i32, i32) {
    %c0_i32 = arith.constant 0 : i32
    %c0_i32_0 = arith.constant 0 : i32
    %c0_i32_1 = arith.constant 0 : i32
    return %c0_i32, %c0_i32_0 : i32, i32
  }
  func.func @transform_1(%arg0: i32) -> (i32, i32) {
    %c0_i32 = arith.constant 0 : i32
    %c0_i32_0 = arith.constant 0 : i32
    %c0_i32_1 = arith.constant 0 : i32
    return %c0_i32, %c0_i32_0 : i32, i32
  }
  func.func @transform_2(%arg0: i32) -> (i32, i32) {
    %c0_i32 = arith.constant 0 : i32
    %c0_i32_0 = arith.constant 0 : i32
    %c0_i32_1 = arith.constant 0 : i32
    return %c0_i32, %c0_i32_0 : i32, i32
  }
  func.func @transform_3(%arg0: i32) -> (i32, i32) {
    %c0_i32 = arith.constant 0 : i32
    %c0_i32_0 = arith.constant 0 : i32
    %c0_i32_1 = arith.constant 0 : i32
    return %c0_i32, %c0_i32_0 : i32, i32
  }
  func.func @transform_4(%arg0: i32) -> (i32, i32) {
    %c0_i32 = arith.constant 0 : i32
    %c0_i32_0 = arith.constant 0 : i32
    return %c0_i32, %arg0 : i32, i32
  }
  func.func @transform_5(%arg0: i32) -> (i32, i32) {
    %c0_i32 = arith.constant 0 : i32
    %c0_i32_0 = arith.constant 0 : i32
    return %c0_i32, %arg0 : i32, i32
  }
}

</mosaic_0001>

<llo_original>
// kernel: tpu_custom_call.1
$region0: #{tpu_custom_call.1}
  #allocation0 [shape = 'u32[]', space=smem, size = 0x4, offset = 0x4, fixed_abs, tag = 'smem constant byte address 0x4 - core index']
  #allocation1 [shape = 'u32[72,128]{1,0:T(1,128)}', space=vmem, size = 0x9000, scoped, tag = 'internal scratch']
  #allocation2 [shape = 'f32[1,1]{1,0:T(1,128)S(6)}', space=smem, size = 0x200, scoped, tag = 'scoped memory for tpu_custom_call.1']
  %s0 = inlined_call_operand.vmem [shape: f32[8,2], index: 0, kind: input, shape index: {}]
  %s1 = inlined_call_operand.vmem [shape: f32[1,8], index: 1, kind: input, shape index: {}]
  %s2 = inlined_call_operand.vmem [shape: f32[1,8], index: 2, kind: input, shape index: {}]
  %s3 = inlined_call_operand.<no memory space> [shape: f32[1,1], index: 3, kind: input, shape index: {}]
  %s4 = inlined_call_operand.vmem [shape: f32[2,512], index: 4, kind: input, shape index: {}]
  %s5 = inlined_call_operand.hbm [shape: f32[1,512], index: 5, kind: output, shape index: {}]
  %s6 = sld [smem:[#allocation0]]
  $region42: #{tpu_custom_call.1} parent=0
    _
  %s8 = ssub.s32 1, %s6
  %s9 = scalar_select 0, %s8, %s6
  %10 = sst [smem:[#allocation2]] %s3
  $region1: #{tpu_custom_call.1} parent=0
    #allocation3 [shape = 'u8[4096]{0}', space=smem, size = 0x1000, scoped, tag = 'input window, operand 0, single buffered']
    #allocation4 [shape = 's32[1]{0}', space=sflag, size = 0x4, scoped, tag = 'scoped memory for tpu_custom_call.1']
    #allocation5 [shape = 's32[1]{0}', space=sflag, size = 0x4, scoped, tag = 'scoped memory for tpu_custom_call.1']
    #allocation6 [shape = 'u8[512]{0}', space=smem, size = 0x200, scoped, tag = 'input window, operand 1, single buffered']
    #allocation7 [shape = 's32[1]{0}', space=sflag, size = 0x4, scoped, tag = 'scoped memory for tpu_custom_call.1']
    #allocation8 [shape = 'u8[512]{0}', space=smem, size = 0x200, scoped, tag = 'input window, operand 2, single buffered']
    #allocation9 [shape = 'u8[2048]{0}', space=vmem, size = 0x800, scoped, tag = 'output window, operand 0, single buffered']
    %11 = vsyncpa [#allocation5], 0
    %12 = vsyncpa [#allocation7], 0
    %13 = vsyncpa [#allocation4], 0
    // Predicated region
    $region2: #{tpu_custom_call.1} parent=1 // pred_check
      _
    $region3: #{tpu_custom_call.1} parent=1 // pred_check_branch
      %15 = sbr.rel (0) target = $region5
    $region4: #{tpu_custom_call.1} parent=1 // pred_region
      %17 = vsyncadd [#allocation5], 0
      %s19 = sshll.u32 %s0, 4
      %s20 = int_to_ptr.vmem [resolvable:$true] %s19
      %22 = dma.vmem_to_smem %s20, 128, [#allocation3], [#allocation5]
    $region5: #{tpu_custom_call.1} parent=1 // pred_fallthru
      _
    // Predicated region
    $region6: #{tpu_custom_call.1} parent=1 // pred_check
      _
    $region7: #{tpu_custom_call.1} parent=1 // pred_check_branch
      %24 = sbr.rel (0) target = $region9
    $region8: #{tpu_custom_call.1} parent=1 // pred_region
      %26 = vsyncadd [#allocation7], 0
      %s28 = sshll.u32 %s1, 4
      %s29 = int_to_ptr.vmem [resolvable:$true] %s28
      %31 = dma.vmem_to_smem %s29, 16, [#allocation6], [#allocation7]
    $region9: #{tpu_custom_call.1} parent=1 // pred_fallthru
      _
    // Predicated region
    $region10: #{tpu_custom_call.1} parent=1 // pred_check
      _
    $region11: #{tpu_custom_call.1} parent=1 // pred_check_branch
      %33 = sbr.rel (0) target = $region13
    $region12: #{tpu_custom_call.1} parent=1 // pred_region
      %35 = vsyncadd [#allocation7], 0
      %s37 = sshll.u32 %s2, 4
      %s38 = int_to_ptr.vmem [resolvable:$true] %s37
      %40 = dma.vmem_to_smem %s38, 16, [#allocation8], [#allocation7]
    $region13: #{tpu_custom_call.1} parent=1 // pred_fallthru
      _
    // Predicated region
    $region14: #{tpu_custom_call.1} parent=1 // pred_check
      _
    $region15: #{tpu_custom_call.1} parent=1 // pred_check_branch
      %42 = sbr.rel (0) target = $region17
    $region16: #{tpu_custom_call.1} parent=1 // pred_region
      _
    $region17: #{tpu_custom_call.1} parent=1 // pred_fallthru
      _
    // Predicated region
    $region18: #{tpu_custom_call.1} parent=1 // pred_check
      _
    $region19: #{tpu_custom_call.1} parent=1 // pred_check_branch
      %44 = sbr.rel (0) target = $region21
    $region20: #{tpu_custom_call.1} parent=1 // pred_region
      _
    $region21: #{tpu_custom_call.1} parent=1 // pred_fallthru
      _
    // Predicated region
    $region22: #{tpu_custom_call.1} parent=1 // pred_check
      _
    $region23: #{tpu_custom_call.1} parent=1 // pred_check_branch
      %46 = sbr.rel (0) target = $region25
    $region24: #{tpu_custom_call.1} parent=1 // pred_region
      %48 = dma.done [#allocation5], 128
    $region25: #{tpu_custom_call.1} parent=1 // pred_fallthru
      _
    // Predicated region
    $region26: #{tpu_custom_call.1} parent=1 // pred_check
      _
    $region27: #{tpu_custom_call.1} parent=1 // pred_check_branch
      %50 = sbr.rel (0) target = $region29
    $region28: #{tpu_custom_call.1} parent=1 // pred_region
      %52 = dma.done [#allocation7], 16
    $region29: #{tpu_custom_call.1} parent=1 // pred_fallthru
      _
    // Predicated region
    $region30: #{tpu_custom_call.1} parent=1 // pred_check
      _
    $region31: #{tpu_custom_call.1} parent=1 // pred_check_branch
      %54 = sbr.rel (0) target = $region33
    $region32: #{tpu_custom_call.1} parent=1 // pred_region
      %56 = dma.done [#allocation7], 16
    $region33: #{tpu_custom_call.1} parent=1 // pred_fallthru
      _
    %57 = sfence
    %v58 = vld [vmem:[%s4] ss:$2 sm:$0xf]
    %s59 = scalar_lea.vmem %s4, 1
    %v60 = vld [vmem:[%s59] ss:$2 sm:$0xf]
    %s61 = sld [smem:[#allocation2]]
    %v62 = vstv %s61
    %v63 = vadd.f32 %v62, 0.0
    %s64 = sld [smem:[#allocation3]]
    %v65 = vstv %s64
    %v66 = vmul.f32 %v58, %v65
    %s67 = sld [smem:[#allocation3 + $0x1]]
    %v68 = vstv %s67
    %v69 = vmul.f32 %v60, %v68
    %v70 = vadd.f32 %v66, %v69
    %s71 = sld [smem:[#allocation6]]
    %v72 = vstv %s71
    %v73 = vadd.f32 %v70, %v72
    %v74 = vmax.f32 %v73, 0.0
    %s75 = sld [smem:[#allocation8]]
    %v76 = vstv %s75
    %v77 = vmul.f32 %v74, %v76
    %v78 = vadd.f32 %v63, %v77
    %s79 = sld [smem:[#allocation3 + $0x80]]
    %v80 = vstv %s79
    %v81 = vmul.f32 %v58, %v80
    %s82 = sld [smem:[#allocation3 + $0x81]]
    %v83 = vstv %s82
    %v84 = vmul.f32 %v60, %v83
    %v85 = vadd.f32 %v81, %v84
    %s86 = sld [smem:[#allocation6 + $0x1]]
    %v87 = vstv %s86
    %v88 = vadd.f32 %v85, %v87
    %v89 = vmax.f32 %v88, 0.0
    %s90 = sld [smem:[#allocation8 + $0x1]]
    %v91 = vstv %s90
    %v92 = vmul.f32 %v89, %v91
    %v93 = vadd.f32 %v78, %v92
    %s94 = sld [smem:[#allocation3 + $0x100]]
    %v95 = vstv %s94
    %v96 = vmul.f32 %v58, %v95
    %s97 = sld [smem:[#allocation3 + $0x101]]
    %v98 = vstv %s97
    %v99 = vmul.f32 %v60, %v98
    %v100 = vadd.f32 %v96, %v99
    %s101 = sld [smem:[#allocation6 + $0x2]]
    %v102 = vstv %s101
    %v103 = vadd.f32 %v100, %v102
    %v104 = vmax.f32 %v103, 0.0
    %s105 = sld [smem:[#allocation8 + $0x2]]
    %v106 = vstv %s105
    %v107 = vmul.f32 %v104, %v106
    %v108 = vadd.f32 %v93, %v107
    %s109 = sld [smem:[#allocation3 + $0x180]]
    %v110 = vstv %s109
    %v111 = vmul.f32 %v58, %v110
    %s112 = sld [smem:[#allocation3 + $0x181]]
    %v113 = vstv %s112
    %v114 = vmul.f32 %v60, %v113
    %v115 = vadd.f32 %v111, %v114
    %s116 = sld [smem:[#allocation6 + $0x3]]
    %v117 = vstv %s116
    %v118 = vadd.f32 %v115, %v117
    %v119 = vmax.f32 %v118, 0.0
    %s120 = sld [smem:[#allocation8 + $0x3]]
    %v121 = vstv %s120
    %v122 = vmul.f32 %v119, %v121
    %v123 = vadd.f32 %v108, %v122
    %s124 = sld [smem:[#allocation3 + $0x200]]
    %v125 = vstv %s124
    %v126 = vmul.f32 %v58, %v125
    %s127 = sld [smem:[#allocation3 + $0x201]]
    %v128 = vstv %s127
    %v129 = vmul.f32 %v60, %v128
    %v130 = vadd.f32 %v126, %v129
    %s131 = sld [smem:[#allocation6 + $0x4]]
    %v132 = vstv %s131
    %v133 = vadd.f32 %v130, %v132
    %v134 = vmax.f32 %v133, 0.0
    %s135 = sld [smem:[#allocation8 + $0x4]]
    %v136 = vstv %s135
    %v137 = vmul.f32 %v134, %v136
    %v138 = vadd.f32 %v123, %v137
    %s139 = sld [smem:[#allocation3 + $0x280]]
    %v140 = vstv %s139
    %v141 = vmul.f32 %v58, %v140
    %s142 = sld [smem:[#allocation3 + $0x281]]
    %v143 = vstv %s142
    %v144 = vmul.f32 %v60, %v143
    %v145 = vadd.f32 %v141, %v144
    %s146 = sld [smem:[#allocation6 + $0x5]]
    %v147 = vstv %s146
    %v148 = vadd.f32 %v145, %v147
    %v149 = vmax.f32 %v148, 0.0
    %s150 = sld [smem:[#allocation8 + $0x5]]
    %v151 = vstv %s150
    %v152 = vmul.f32 %v149, %v151
    %v153 = vadd.f32 %v138, %v152
    %s154 = sld [smem:[#allocation3 + $0x300]]
    %v155 = vstv %s154
    %v156 = vmul.f32 %v58, %v155
    %s157 = sld [smem:[#allocation3 + $0x301]]
    %v158 = vstv %s157
    %v159 = vmul.f32 %v60, %v158
    %v160 = vadd.f32 %v156, %v159
    %s161 = sld [smem:[#allocation6 + $0x6]]
    %v162 = vstv %s161
    %v163 = vadd.f32 %v160, %v162
    %v164 = vmax.f32 %v163, 0.0
    %s165 = sld [smem:[#allocation8 + $0x6]]
    %v166 = vstv %s165
    %v167 = vmul.f32 %v164, %v166
    %v168 = vadd.f32 %v153, %v167
    %s169 = sld [smem:[#allocation3 + $0x380]]
    %v170 = vstv %s169
    %v171 = vmul.f32 %v58, %v170
    %s172 = sld [smem:[#allocation3 + $0x381]]
    %v173 = vstv %s172
    %v174 = vmul.f32 %v60, %v173
    %v175 = vadd.f32 %v171, %v174
    %s176 = sld [smem:[#allocation6 + $0x7]]
    %v177 = vstv %s176
    %v178 = vadd.f32 %v175, %v177
    %v179 = vmax.f32 %v178, 0.0
    %s180 = sld [smem:[#allocation8 + $0x7]]
    %v181 = vstv %s180
    %v182 = vmul.f32 %v179, %v181
    %v183 = vadd.f32 %v168, %v182
    %v184 = vlaneseq
    %vm185 = vcmp.ge.s32.totalorder %v184, 0
    %vm186 = vcmp.lt.s32.totalorder %v184, 512
    %vm187 = vmand %vm185, %vm186
    %188 = vst.msk [vmem:[#allocation9] sm:$0xf] %vm187, %v183
    // Predicated region
    $region34: #{tpu_custom_call.1} parent=1 // pred_check
      _
    $region35: #{tpu_custom_call.1} parent=1 // pred_check_branch
      %190 = sbr.rel (0) target = $region37
    $region36: #{tpu_custom_call.1} parent=1 // pred_region
      %192 = vsyncadd [#allocation4], 0
      %s194 = sshll.u32 [#allocation9], 4
      %s195 = int_to_ptr.vmem [resolvable:$true] %s194
      %s196 = sshll.u32 %s5, 4
      %s197 = int_to_ptr.hbm [resolvable:$true] %s196
      %199 = dma.vmem_to_hbm [thread:$0]  %s195, 64, %s197, [#allocation4]
    $region37: #{tpu_custom_call.1} parent=1 // pred_fallthru
      _
    // Predicated region
    $region38: #{tpu_custom_call.1} parent=1 // pred_check
      _
    $region39: #{tpu_custom_call.1} parent=1 // pred_check_branch
      %201 = sbr.rel (0) target = $region41
    $region40: #{tpu_custom_call.1} parent=1 // pred_region
      %203 = dma.done [#allocation4], 64
    $region41: #{tpu_custom_call.1} parent=1 // pred_fallthru
      _
    %204 = vsyncpa [#allocation4], 1
    %205 = vsyncpa [#allocation5], 1
    %206 = vsyncpa [#allocation7], 1

</llo_original>
